<compile_context>
chip_gen: v5e
topology: v5e:2x2
jax: 0.10.0
libtpu: 0.0.40
codegen_flags: <defaults>
</compile_context>

<pallas_src>
import functools

import jax
import jax.numpy as jnp
from jax.experimental import pallas as pl
from jax.experimental.pallas import tpu as pltpu


def _round_up(x, m):
    return (x + m - 1) // m * m


def _cdiv(a, b):
    return -(-a // b)


# ---------------------------------------------------------------------------
# Kernel
# ---------------------------------------------------------------------------
def _realnvp_fl_kernel(
    x_ref, w1_ref, b1_ref, w2_ref, b2_ref, w3_ref, b3_ref,
    z_ref, logdet_ref, *, zp, d1p,
):
    f32 = jnp.float32
    x = x_ref[...]                                  # [TB, ZP]  (lower | upper | zero pad)
    # Layer 1 only needs the lower half; slice is static and 128-lane aligned.
    xl = x if d1p == zp else x[:, :d1p]

    h = jnp.dot(xl, w1_ref[...], preferred_element_type=f32) + b1_ref[...]
    h = jnp.tanh(h).astype(w2_ref.dtype)            # tanh/exp kept in f32 (v5e-safe)
    h = jnp.dot(h, w2_ref[...], preferred_element_type=f32) + b2_ref[...]
    h = jnp.tanh(h).astype(w3_ref.dtype)
    y = jnp.dot(h, w3_ref[...], preferred_element_type=f32) + b3_ref[...]  # [TB, 2*ZP] f32

    t1 = y[:, :zp]                                  # nonzero only in cols [d1, d1+d2)
    s1 = y[:, zp:]                                  # nonzero only in cols [d1, d1+d2)

    # Packing invariant: w3/b3 are exactly zero outside columns [d1, d1+d2) of each
    # half, so t1 == s1 == 0 there and no mask is needed:
    #   lower cols : t1=0, s1=0  ->  x * exp(0) = x
    #   pad   cols : x=0,  t1=0  ->  0
    z_ref[...] = (t1 + x.astype(f32) * jnp.exp(s1)).astype(z_ref.dtype)

    # log_det = sum(s1); padding lanes are exactly 0, so a full-lane sum is correct.
    ld = jnp.sum(s1, axis=-1, keepdims=True)                    # [TB, 1]
    logdet_ref[...] = jnp.broadcast_to(ld, logdet_ref.shape)    # [TB, 8] (tiny store)


# ---------------------------------------------------------------------------
# One-time parameter packing (hoisted out of the per-call path)
# ---------------------------------------------------------------------------
def pack_realnvp_fl_params(params, dim_1, dim_2, weight_dtype=jnp.bfloat16):
    """Fuse the t- and s-nets into one lane-padded 3-layer MLP.

    Layout (zeros everywhere outside the real blocks — the kernel relies on this):
      W1f [D1P, HF]   rows [0:d1] carry  t_w1 | s_w1
      W2f [HF,  HF]   block-diag(t_w2, s_w2)
      W3f [HF, 2*ZP]  t_w3 -> cols [d1:d1+d2) of half 0, s_w3 -> same cols of half 1
    with D1P = rup(d1,128), ZP = rup(d1+d2,128), HF = rup(2H,128).
    """
    f32 = jnp.float32
    H = params["t_w1"].shape[1]
    D = dim_1 + dim_2
    ZP = _round_up(D, 128)
    D1P = _round_up(dim_1, 128)
    HF = _round_up(2 * H, 128)

    w1 = (jnp.zeros((D1P, HF), f32)
          .at[:dim_1, :H].set(params["t_w1"].astype(f32))
          .at[:dim_1, H:2 * H].set(params["s_w1"].astype(f32)))
    b1 = (jnp.zeros((1, HF), f32)
          .at[:, :H].set(params["t_b1"].reshape(1, -1).astype(f32))
          .at[:, H:2 * H].set(params["s_b1"].reshape(1, -1).astype(f32)))
    w2 = (jnp.zeros((HF, HF), f32)
          .at[:H, :H].set(params["t_w2"].astype(f32))
          .at[H:2 * H, H:2 * H].set(params["s_w2"].astype(f32)))
    b2 = (jnp.zeros((1, HF), f32)
          .at[:, :H].set(params["t_b2"].reshape(1, -1).astype(f32))
          .at[:, H:2 * H].set(params["s_b2"].reshape(1, -1).astype(f32)))
    w3 = (jnp.zeros((HF, 2 * ZP), f32)
          .at[:H, dim_1:dim_1 + dim_2].set(params["t_w3"].astype(f32))
          .at[H:2 * H, ZP + dim_1:ZP + dim_1 + dim_2].set(params["s_w3"].astype(f32)))
    b3 = (jnp.zeros((1, 2 * ZP), f32)
          .at[:, dim_1:dim_1 + dim_2].set(params["t_b3"].reshape(1, -1).astype(f32))
          .at[:, ZP + dim_1:ZP + dim_1 + dim_2].set(params["s_b3"].reshape(1, -1).astype(f32)))

    # Weights (and therefore the x/z streams) in weight_dtype; biases stay f32
    # (tiny, added after f32 accumulation).  Zero padding is exact in bf16.
    return dict(w1=w1.astype(weight_dtype), b1=b1,
                w2=w2.astype(weight_dtype), b2=b2,
                w3=w3.astype(weight_dtype), b3=b3)


# ---------------------------------------------------------------------------
# Forward wrapper
# ---------------------------------------------------------------------------
def realnvp_fl_forward(x, packed, *, block_b=2048):
    """Forward of RealNVPLayerFL. x: [B, dim_1+dim_2]. Returns (z [B, D], log_det [B])."""
    B, D = x.shape
    w1, b1, w2, b2, w3, b3 = (packed[k] for k in ("w1", "b1", "w2", "b2", "w3", "b3"))
    D1P, HF = w1.shape
    ZP = w3.shape[1] // 2
    assert D <= ZP, "packed params do not match input feature width"
    stream_dtype = w1.dtype

    # Balanced batch tiling: TB is a multiple of 8, B_pad never overshoots by ~2x,
    # and large single-tile batches split in two so both v7x TCs get a grid step.
    block_b = max(8, _round_up(int(block_b), 8))
    n_steps = max(1, _cdiv(B, block_b))
    if n_steps == 1 and B > 512:
        n_steps = 2
    TB = _round_up(_cdiv(B, n_steps), 8)
    B_pad = TB * n_steps

    # Pad/cast x only when needed (skip the extra HBM pass if already aligned).
    if B_pad == B and ZP == D:
        x_in = x.astype(stream_dtype)
    else:
        x_in = jnp.zeros((B_pad, ZP), stream_dtype).at[:B, :D].set(x.astype(stream_dtype))

    kernel = functools.partial(_realnvp_fl_kernel, zp=ZP, d1p=D1P)

    def resident(shape):  # constant index map -> stays VMEM-resident across grid steps
        return pl.BlockSpec(shape, lambda i: (0, 0))

    isz = w1.dtype.itemsize
    wbytes = (w1.size + w2.size + w3.size) * isz + (b1.size + b2.size + b3.size) * 4
    vmem_need = (4 * TB * ZP * isz                 # x + z blocks, double-buffered
                 + 2 * TB * 8 * 4                  # log_det blocks
                 + 2 * wbytes                      # resident weights (double-buffered)
                 + 4 * TB * (HF + 2 * ZP) * 4)     # f32 intermediates headroom
    vmem_limit = int(min(64 * 2 ** 20, max(32 * 2 ** 20, 2 * vmem_need)))

    flops = 2 * B_pad * (D1P * HF + HF * HF + HF * 2 * ZP)
    transcendentals = B_pad * (2 * HF + ZP)
    bytes_accessed = 2 * B_pad * ZP * isz + B_pad * 8 * 4 + wbytes

    z_pad, logdet_pad = pl.pallas_call(
        kernel,
        out_shape=(
            jax.ShapeDtypeStruct((B_pad, ZP), stream_dtype),
            jax.ShapeDtypeStruct((B_pad, 8), jnp.float32),
        ),
        grid=(n_steps,),
        in_specs=[
            pl.BlockSpec((TB, ZP), lambda i: (i, 0)),        # x (streamed)
            resident((D1P, HF)), resident((1, HF)),          # W1f, b1f
            resident((HF, HF)), resident((1, HF)),           # W2f, b2f
            resident((HF, 2 * ZP)), resident((1, 2 * ZP)),   # W3f, b3f
        ],
        out_specs=(
            pl.BlockSpec((TB, ZP), lambda i: (i, 0)),        # z (streamed, lane-dense)
            pl.BlockSpec((TB, 8), lambda i: (i, 0)),         # log_det (narrow block)
        ),
        compiler_params=pltpu.CompilerParams(
            dimension_semantics=("parallel",),
            vmem_limit_bytes=vmem_limit),
        cost_estimate=pl.CostEstimate(
            flops=flops, transcendentals=transcendentals, bytes_accessed=bytes_accessed),
    )(x_in, w1, b1, w2, b2, w3, b3)

    z = z_pad[:B, :D]
    log_det = logdet_pad[:B, 0]
    return z, log_det


# ---------------------------------------------------------------------------
# Reference + init (pure JAX, mirrors the PyTorch module)
# ---------------------------------------------------------------------------
def init_params(key, dim_1, dim_2, hidden_dim):
    """Deterministic PyTorch-style uniform(-1/sqrt(fan_in), 1/sqrt(fan_in)) init."""
    def linear(k, fan_in, fan_out):
        kw, kb = jax.random.split(k)
        bound = 1.0 / jnp.sqrt(jnp.float32(fan_in))
        w = jax.random.uniform(kw, (fan_in, fan_out), jnp.float32, -bound, bound)
        b = jax.random.uniform(kb, (1, fan_out), jnp.float32, -bound, bound)
        return w, b

    keys = jax.random.split(key, 6)
    t_w1, t_b1 = linear(keys[0], dim_1, hidden_dim)
    t_w2, t_b2 = linear(keys[1], hidden_dim, hidden_dim)
    t_w3, t_b3 = linear(keys[2], hidden_dim, dim_2)
    s_w1, s_b1 = linear(keys[3], dim_1, hidden_dim)
    s_w2, s_b2 = linear(keys[4], hidden_dim, hidden_dim)
    s_w3, s_b3 = linear(keys[5], hidden_dim, dim_2)
    return dict(
        t_w1=t_w1, t_b1=t_b1, t_w2=t_w2, t_b2=t_b2, t_w3=t_w3, t_b3=t_b3,
        s_w1=s_w1, s_b1=s_b1, s_w2=s_w2, s_b2=s_b2, s_w3=s_w3, s_b3=s_b3,
    )


def reference_forward(x, params, dim_1, dim_2, compute_dtype=jnp.float32):
    """Pure-JAX reference. compute_dtype=bf16 mimics the kernel's mixed precision."""
    f32 = jnp.float32

    def q(a):
        return a.astype(compute_dtype)

    lower, upper = x[:, :dim_1], x[:, dim_1:]

    def mlp(inp, pfx):
        h = jnp.tanh(jnp.dot(q(inp), q(params[pfx + "_w1"]), preferred_element_type=f32)
                     + params[pfx + "_b1"].astype(f32))
        h = jnp.tanh(jnp.dot(q(h), q(params[pfx + "_w2"]), preferred_element_type=f32)
                     + params[pfx + "_b2"].astype(f32))
        return (jnp.dot(q(h), q(params[pfx + "_w3"]), preferred_element_type=f32)
                + params[pfx + "_b3"].astype(f32))

    t1 = mlp(lower, "t")
    s1 = mlp(lower, "s")
    upper_new = t1 + q(upper).astype(f32) * jnp.exp(s1)
    z = jnp.concatenate([q(lower).astype(f32), upper_new], axis=-1)
    log_det = jnp.sum(s1, axis=-1)
    return z, log_det


if __name__ == "__main__":
    # in_dim = (dim_1, dim_2); x has dim_1 + dim_2 features.
    dim_1, dim_2, hidden_dim = 8, 8, 32
    batch = 8

    key = jax.random.PRNGKey(0)
    kx, kp = jax.random.split(key)
    x = jax.random.normal(kx, (batch, dim_1 + dim_2), jnp.float32)
    params = init_params(kp, dim_1, dim_2, hidden_dim)

    fwd = jax.jit(realnvp_fl_forward)

    # --- default bf16 streams/weights (fast path) vs bf16-quantized reference ---
    packed_bf16 = pack_realnvp_fl_params(params, dim_1, dim_2, weight_dtype=jnp.bfloat16)
    z, log_det = fwd(x, packed_bf16)
    z = jax.block_until_ready(z)
    log_det = jax.block_until_ready(log_det)

    assert z.shape == (batch, dim_1 + dim_2)
    assert log_det.shape == (batch,)
    z_ref16, ld_ref16 = reference_forward(x, params, dim_1, dim_2, compute_dtype=jnp.bfloat16)
    zf = z.astype(jnp.float32)
    assert jnp.allclose(zf, z_ref16, atol=1e-2, rtol=1e-2), jnp.max(jnp.abs(zf - z_ref16))
    assert jnp.allclose(log_det, ld_ref16, atol=1e-2, rtol=1e-2), jnp.max(
        jnp.abs(log_det - ld_ref16))

    # --- full-f32 path vs exact module semantics ---
    packed_f32 = pack_realnvp_fl_params(params, dim_1, dim_2, weight_dtype=jnp.float32)
    z32, ld32 = fwd(x, packed_f32)
    z32 = jax.block_until_ready(z32)
    ld32 = jax.block_until_ready(ld32)
    z_ref, ld_ref = reference_forward(x, params, dim_1, dim_2)
    assert jnp.allclose(z32, z_ref, atol=2e-4, rtol=2e-4), jnp.max(jnp.abs(z32 - z_ref))
    assert jnp.allclose(ld32, ld_ref, atol=2e-4, rtol=2e-4), jnp.max(jnp.abs(ld32 - ld_ref))

    print("KERNEL_OK")
</pallas_src>

<mosaic_0001>
module attributes {stable_mosaic.version = 11 : i64} {
  func.func @_realnvp_fl_kernel(%arg0: i32, %arg1: memref<8x128xbf16, #tpu.memory_space<vmem>>, %arg2: memref<128x128xbf16, #tpu.memory_space<vmem>>, %arg3: memref<1x128xf32, #tpu.memory_space<vmem>>, %arg4: memref<128x128xbf16, #tpu.memory_space<vmem>>, %arg5: memref<1x128xf32, #tpu.memory_space<vmem>>, %arg6: memref<128x256xbf16, #tpu.memory_space<vmem>>, %arg7: memref<1x256xf32, #tpu.memory_space<vmem>>, %arg8: memref<8x128xbf16, #tpu.memory_space<vmem>>, %arg9: memref<8x8xf32, #tpu.memory_space<vmem>>) attributes {dimension_semantics = [#tpu.dimension_semantics<parallel>], iteration_bounds = array<i64: 1>, scalar_prefetch = 0 : i64, scratch_operands = 0 : i64, tpu.core_type = #tpu.core_type<tc>, window_params = [{transform_indices = @transform_0, window_bounds = array<i64: 8, 128>}, {pipeline_mode = #tpu.pipeline_mode<synchronous>, transform_indices = @transform_1, window_bounds = array<i64: 128, 128>}, {pipeline_mode = #tpu.pipeline_mode<synchronous>, transform_indices = @transform_2, window_bounds = array<i64: 1, 128>}, {pipeline_mode = #tpu.pipeline_mode<synchronous>, transform_indices = @transform_3, window_bounds = array<i64: 128, 128>}, {pipeline_mode = #tpu.pipeline_mode<synchronous>, transform_indices = @transform_4, window_bounds = array<i64: 1, 128>}, {pipeline_mode = #tpu.pipeline_mode<synchronous>, transform_indices = @transform_5, window_bounds = array<i64: 128, 256>}, {pipeline_mode = #tpu.pipeline_mode<synchronous>, transform_indices = @transform_6, window_bounds = array<i64: 1, 256>}, {transform_indices = @transform_7, window_bounds = array<i64: 8, 128>}, {transform_indices = @transform_8, window_bounds = array<i64: 8, 8>}]} {
    %c0 = arith.constant 0 : index
    %c0_0 = arith.constant 0 : index
    %0 = vector.load %arg1[%c0, %c0_0] : memref<8x128xbf16, #tpu.memory_space<vmem>>, vector<8x128xbf16>
    %c0_1 = arith.constant 0 : index
    %c0_2 = arith.constant 0 : index
    %1 = vector.load %arg2[%c0_1, %c0_2] : memref<128x128xbf16, #tpu.memory_space<vmem>>, vector<128x128xbf16>
    %cst = arith.constant dense<0.000000e+00> : vector<8x128xf32>
    %2 = tpu.matmul %0, %1, %cst {dimension_numbers = #tpu.dot_dimension_numbers<[1], [0], [0], [1], [0, 0, 1, 1], [], []>} : vector<8x128xbf16>, vector<128x128xbf16>, vector<8x128xf32> -> vector<8x128xf32>
    %c0_3 = arith.constant 0 : index
    %c0_4 = arith.constant 0 : index
    %3 = vector.load %arg3[%c0_3, %c0_4] : memref<1x128xf32, #tpu.memory_space<vmem>>, vector<1x128xf32>
    %4 = vector.broadcast %3 : vector<1x128xf32> to vector<8x128xf32>
    %5 = arith.addf %2, %4 : vector<8x128xf32>
    %6 = math.tanh %5 : vector<8x128xf32>
    %7 = arith.truncf %6 : vector<8x128xf32> to vector<8x128xbf16>
    %c0_5 = arith.constant 0 : index
    %c0_6 = arith.constant 0 : index
    %8 = vector.load %arg4[%c0_5, %c0_6] : memref<128x128xbf16, #tpu.memory_space<vmem>>, vector<128x128xbf16>
    %cst_7 = arith.constant dense<0.000000e+00> : vector<8x128xf32>
    %9 = tpu.matmul %7, %8, %cst_7 {dimension_numbers = #tpu.dot_dimension_numbers<[1], [0], [0], [1], [0, 0, 1, 1], [], []>} : vector<8x128xbf16>, vector<128x128xbf16>, vector<8x128xf32> -> vector<8x128xf32>
    %c0_8 = arith.constant 0 : index
    %c0_9 = arith.constant 0 : index
    %10 = vector.load %arg5[%c0_8, %c0_9] : memref<1x128xf32, #tpu.memory_space<vmem>>, vector<1x128xf32>
    %11 = vector.broadcast %10 : vector<1x128xf32> to vector<8x128xf32>
    %12 = arith.addf %9, %11 : vector<8x128xf32>
    %13 = math.tanh %12 : vector<8x128xf32>
    %14 = arith.truncf %13 : vector<8x128xf32> to vector<8x128xbf16>
    %c0_10 = arith.constant 0 : index
    %c0_11 = arith.constant 0 : index
    %15 = vector.load %arg6[%c0_10, %c0_11] : memref<128x256xbf16, #tpu.memory_space<vmem>>, vector<128x256xbf16>
    %cst_12 = arith.constant dense<0.000000e+00> : vector<8x256xf32>
    %16 = tpu.matmul %14, %15, %cst_12 {dimension_numbers = #tpu.dot_dimension_numbers<[1], [0], [0], [1], [0, 0, 1, 1], [], []>} : vector<8x128xbf16>, vector<128x256xbf16>, vector<8x256xf32> -> vector<8x256xf32>
    %c0_13 = arith.constant 0 : index
    %c0_14 = arith.constant 0 : index
    %17 = vector.load %arg7[%c0_13, %c0_14] : memref<1x256xf32, #tpu.memory_space<vmem>>, vector<1x256xf32>
    %18 = vector.broadcast %17 : vector<1x256xf32> to vector<8x256xf32>
    %19 = arith.addf %16, %18 : vector<8x256xf32>
    %20 = vector.extract_strided_slice %19 {offsets = [0, 0], sizes = [8, 128], strides = [1, 1]} : vector<8x256xf32> to vector<8x128xf32>
    %21 = vector.extract_strided_slice %19 {offsets = [0, 128], sizes = [8, 128], strides = [1, 1]} : vector<8x256xf32> to vector<8x128xf32>
    %22 = arith.extf %0 : vector<8x128xbf16> to vector<8x128xf32>
    %23 = math.exp %21 : vector<8x128xf32>
    %24 = arith.mulf %22, %23 : vector<8x128xf32>
    %25 = arith.addf %20, %24 : vector<8x128xf32>
    %26 = arith.truncf %25 : vector<8x128xf32> to vector<8x128xbf16>
    %c0_15 = arith.constant 0 : index
    %c0_16 = arith.constant 0 : index
    %27 = vector.load %arg8[%c0_15, %c0_16] : memref<8x128xbf16, #tpu.memory_space<vmem>>, vector<8x128xbf16>
    tpu.vector_store %arg8[%c0_15, %c0_16], %26 {strides = array<i32>} : memref<8x128xbf16, #tpu.memory_space<vmem>>, vector<8x128xbf16>,
    %cst_17 = arith.constant dense<0.000000e+00> : vector<8xf32>
    %28 = vector.multi_reduction <add>, %21, %cst_17 [1] : vector<8x128xf32> to vector<8xf32>
    %29 = vector.shape_cast %28 : vector<8xf32> to vector<8x1xf32>
    %30 = vector.shape_cast %29 : vector<8x1xf32> to vector<8x1xf32>
    %31 = vector.broadcast %30 : vector<8x1xf32> to vector<8x8xf32>
    %c0_18 = arith.constant 0 : index
    %c0_19 = arith.constant 0 : index
    %32 = vector.load %arg9[%c0_18, %c0_19] : memref<8x8xf32, #tpu.memory_space<vmem>>, vector<8x8xf32>
    tpu.vector_store %arg9[%c0_18, %c0_19], %31 {strides = array<i32>} : memref<8x8xf32, #tpu.memory_space<vmem>>, vector<8x8xf32>,
    return
  }
  func.func @transform_0(%arg0: i32) -> (i32, i32) {
    %c0_i32 = arith.constant 0 : i32
    %c0_i32_0 = arith.constant 0 : i32
    return %arg0, %c0_i32 : i32, i32
  }
  func.func @transform_1(%arg0: i32) -> (i32, i32) {
    %c0_i32 = arith.constant 0 : i32
    %c0_i32_0 = arith.constant 0 : i32
    %c0_i32_1 = arith.constant 0 : i32
    return %c0_i32, %c0_i32_0 : i32, i32
  }
  func.func @transform_2(%arg0: i32) -> (i32, i32) {
    %c0_i32 = arith.constant 0 : i32
    %c0_i32_0 = arith.constant 0 : i32
    %c0_i32_1 = arith.constant 0 : i32
    return %c0_i32, %c0_i32_0 : i32, i32
  }
  func.func @transform_3(%arg0: i32) -> (i32, i32) {
    %c0_i32 = arith.constant 0 : i32
    %c0_i32_0 = arith.constant 0 : i32
    %c0_i32_1 = arith.constant 0 : i32
    return %c0_i32, %c0_i32_0 : i32, i32
  }
  func.func @transform_4(%arg0: i32) -> (i32, i32) {
    %c0_i32 = arith.constant 0 : i32
    %c0_i32_0 = arith.constant 0 : i32
    %c0_i32_1 = arith.constant 0 : i32
    return %c0_i32, %c0_i32_0 : i32, i32
  }
  func.func @transform_5(%arg0: i32) -> (i32, i32) {
    %c0_i32 = arith.constant 0 : i32
    %c0_i32_0 = arith.constant 0 : i32
    %c0_i32_1 = arith.constant 0 : i32
    return %c0_i32, %c0_i32_0 : i32, i32
  }
  func.func @transform_6(%arg0: i32) -> (i32, i32) {
    %c0_i32 = arith.constant 0 : i32
    %c0_i32_0 = arith.constant 0 : i32
    %c0_i32_1 = arith.constant 0 : i32
    return %c0_i32, %c0_i32_0 : i32, i32
  }
  func.func @transform_7(%arg0: i32) -> (i32, i32) {
    %c0_i32 = arith.constant 0 : i32
    %c0_i32_0 = arith.constant 0 : i32
    return %arg0, %c0_i32 : i32, i32
  }
  func.func @transform_8(%arg0: i32) -> (i32, i32) {
    %c0_i32 = arith.constant 0 : i32
    %c0_i32_0 = arith.constant 0 : i32
    return %arg0, %c0_i32 : i32, i32
  }
}

</mosaic_0001>

<llo_original>
// kernel: realnvp_fl_forward.1
$region0: #{realnvp_fl_forward.1}
  #allocation0 [shape = 'u32[]', space=smem, size = 0x4, offset = 0x4, fixed_abs, tag = 'smem constant byte address 0x4 - core index']
  #allocation1 [shape = 'u32[72,128]{1,0:T(1,128)}', space=vmem, size = 0x9000, scoped, tag = 'internal scratch']
  %s0 = inlined_call_operand.vmem [shape: bf16[8,128], index: 0, kind: input, shape index: {}]
  %s1 = inlined_call_operand.hbm [shape: bf16[128,128], index: 1, kind: input, shape index: {}]
  %s2 = inlined_call_operand.vmem [shape: f32[1,128], index: 2, kind: input, shape index: {}]
  %s3 = inlined_call_operand.hbm [shape: bf16[128,128], index: 3, kind: input, shape index: {}]
  %s4 = inlined_call_operand.vmem [shape: f32[1,128], index: 4, kind: input, shape index: {}]
  %s5 = inlined_call_operand.hbm [shape: bf16[128,256], index: 5, kind: input, shape index: {}]
  %s6 = inlined_call_operand.vmem [shape: f32[1,256], index: 6, kind: input, shape index: {}]
  %s7 = inlined_call_operand.hbm [shape: bf16[8,128], index: 7, kind: output, shape index: {0}]
  %s8 = inlined_call_operand.vmem [shape: f32[8,8], index: 8, kind: output, shape index: {1}]
  %9 = xla_tuple %s7, %s8
  %s10 = sld [smem:[#allocation0]]
  $region58: #{realnvp_fl_forward.1} parent=0
    _
  %s12 = ssub.s32 1, %s10
  %s13 = scalar_select 0, %s12, %s10
  $region1: #{realnvp_fl_forward.1} parent=0
    #allocation2 [shape = 'u8[32768]{0}', space=vmem, size = 0x8000, scoped, tag = 'input window, operand 1, single buffered']
    #allocation3 [shape = 's32[1]{0}', space=sflag, size = 0x4, scoped, tag = 'scoped memory for realnvp_fl_forward.1']
    #allocation4 [shape = 's32[1]{0}', space=sflag, size = 0x4, scoped, tag = 'scoped memory for realnvp_fl_forward.1']
    #allocation5 [shape = 'u8[32768]{0}', space=vmem, size = 0x8000, scoped, tag = 'input window, operand 3, single buffered']
    #allocation6 [shape = 's32[1]{0}', space=sflag, size = 0x4, scoped, tag = 'scoped memory for realnvp_fl_forward.1']
    #allocation7 [shape = 'u8[65536]{0}', space=vmem, size = 0x10000, scoped, tag = 'input window, operand 5, single buffered']
    #allocation8 [shape = 'u8[2048]{0}', space=vmem, size = 0x800, scoped, tag = 'output window, operand 0, single buffered']
    %14 = vsyncpa [#allocation3], 0
    %15 = vsyncpa [#allocation6], 0
    %16 = vsyncpa [#allocation4], 0
    // Predicated region
    $region2: #{realnvp_fl_forward.1} parent=1 // pred_check
      _
    $region3: #{realnvp_fl_forward.1} parent=1 // pred_check_branch
      %18 = sbr.rel (0) target = $region5
    $region4: #{realnvp_fl_forward.1} parent=1 // pred_region
      _
    $region5: #{realnvp_fl_forward.1} parent=1 // pred_fallthru
      _
    // Predicated region
    $region6: #{realnvp_fl_forward.1} parent=1 // pred_check
      _
    $region7: #{realnvp_fl_forward.1} parent=1 // pred_check_branch
      %20 = sbr.rel (0) target = $region9
    $region8: #{realnvp_fl_forward.1} parent=1 // pred_region
      %22 = vsyncadd [#allocation3], 0
      %s23 = sshll.u32 %s1, 4
      %s24 = int_to_ptr.hbm [resolvable:$true] %s23
      %s25 = sshll.u32 [#allocation2], 4
      %s26 = int_to_ptr.vmem [resolvable:$true] %s25
      %31 = dma.hbm_to_vmem [thread:$0]  %s24, 1024, %s26, [#allocation3], 64, 64, 4
    $region9: #{realnvp_fl_forward.1} parent=1 // pred_fallthru
      _
    // Predicated region
    $region10: #{realnvp_fl_forward.1} parent=1 // pred_check
      _
    $region11: #{realnvp_fl_forward.1} parent=1 // pred_check_branch
      %33 = sbr.rel (0) target = $region13
    $region12: #{realnvp_fl_forward.1} parent=1 // pred_region
      _
    $region13: #{realnvp_fl_forward.1} parent=1 // pred_fallthru
      _
    // Predicated region
    $region14: #{realnvp_fl_forward.1} parent=1 // pred_check
      _
    $region15: #{realnvp_fl_forward.1} parent=1 // pred_check_branch
      %35 = sbr.rel (0) target = $region17
    $region16: #{realnvp_fl_forward.1} parent=1 // pred_region
      %37 = vsyncadd [#allocation6], 0
      %s38 = sshll.u32 %s3, 4
      %s39 = int_to_ptr.hbm [resolvable:$true] %s38
      %s40 = sshll.u32 [#allocation5], 4
      %s41 = int_to_ptr.vmem [resolvable:$true] %s40
      %46 = dma.hbm_to_vmem [thread:$0]  %s39, 1024, %s41, [#allocation6], 64, 64, 4
    $region17: #{realnvp_fl_forward.1} parent=1 // pred_fallthru
      _
    // Predicated region
    $region18: #{realnvp_fl_forward.1} parent=1 // pred_check
      _
    $region19: #{realnvp_fl_forward.1} parent=1 // pred_check_branch
      %48 = sbr.rel (0) target = $region21
    $region20: #{realnvp_fl_forward.1} parent=1 // pred_region
      _
    $region21: #{realnvp_fl_forward.1} parent=1 // pred_fallthru
      _
    // Predicated region
    $region22: #{realnvp_fl_forward.1} parent=1 // pred_check
      _
    $region23: #{realnvp_fl_forward.1} parent=1 // pred_check_branch
      %50 = sbr.rel (0) target = $region25
    $region24: #{realnvp_fl_forward.1} parent=1 // pred_region
      %52 = vsyncadd [#allocation6], 0
      %s53 = sshll.u32 %s5, 4
      %s54 = int_to_ptr.hbm [resolvable:$true] %s53
      %s55 = sshll.u32 [#allocation7], 4
      %s56 = int_to_ptr.vmem [resolvable:$true] %s55
      %61 = dma.hbm_to_vmem [thread:$0]  %s54, 2048, %s56, [#allocation6], 128, 128, 8
    $region25: #{realnvp_fl_forward.1} parent=1 // pred_fallthru
      _
    // Predicated region
    $region26: #{realnvp_fl_forward.1} parent=1 // pred_check
      _
    $region27: #{realnvp_fl_forward.1} parent=1 // pred_check_branch
      %63 = sbr.rel (0) target = $region29
    $region28: #{realnvp_fl_forward.1} parent=1 // pred_region
      _
    $region29: #{realnvp_fl_forward.1} parent=1 // pred_fallthru
      _
    // Predicated region
    $region30: #{realnvp_fl_forward.1} parent=1 // pred_check
      _
    $region31: #{realnvp_fl_forward.1} parent=1 // pred_check_branch
      %65 = sbr.rel (0) target = $region33
    $region32: #{realnvp_fl_forward.1} parent=1 // pred_region
      %67 = dma.done [#allocation3], 1024
    $region33: #{realnvp_fl_forward.1} parent=1 // pred_fallthru
      _
    // Predicated region
    $region34: #{realnvp_fl_forward.1} parent=1 // pred_check
      _
    $region35: #{realnvp_fl_forward.1} parent=1 // pred_check_branch
      %69 = sbr.rel (0) target = $region37
    $region36: #{realnvp_fl_forward.1} parent=1 // pred_region
      %71 = dma.done [#allocation6], 1024
    $region37: #{realnvp_fl_forward.1} parent=1 // pred_fallthru
      _
    // Predicated region
    $region38: #{realnvp_fl_forward.1} parent=1 // pred_check
      _
    $region39: #{realnvp_fl_forward.1} parent=1 // pred_check_branch
      %73 = sbr.rel (0) target = $region41
    $region40: #{realnvp_fl_forward.1} parent=1 // pred_region
      %75 = dma.done [#allocation6], 2048
    $region41: #{realnvp_fl_forward.1} parent=1 // pred_fallthru
      _
    %v76 = vld [vmem:[%s0] sm:$0xf]
    %v77 = vld [vmem:[#allocation2] sm:$0xf]
    %v78 = vld [vmem:[#allocation2 + $0x4] sm:$0xf]
    %v79 = vld [vmem:[#allocation2 + $0x8] sm:$0xf]
    %v80 = vld [vmem:[#allocation2 + $0xc] sm:$0xf]
    %v81 = vld [vmem:[#allocation2 + $0x10] sm:$0xf]
    %v82 = vld [vmem:[#allocation2 + $0x14] sm:$0xf]
    %v83 = vld [vmem:[#allocation2 + $0x18] sm:$0xf]
    %v84 = vld [vmem:[#allocation2 + $0x1c] sm:$0xf]
    %v85 = vld [vmem:[#allocation2 + $0x20] sm:$0xf]
    %v86 = vld [vmem:[#allocation2 + $0x24] sm:$0xf]
    %v87 = vld [vmem:[#allocation2 + $0x28] sm:$0xf]
    %v88 = vld [vmem:[#allocation2 + $0x2c] sm:$0xf]
    %v89 = vld [vmem:[#allocation2 + $0x30] sm:$0xf]
    %v90 = vld [vmem:[#allocation2 + $0x34] sm:$0xf]
    %v91 = vld [vmem:[#allocation2 + $0x38] sm:$0xf]
    %v92 = vld [vmem:[#allocation2 + $0x3c] sm:$0xf]
    %v93 = vld [vmem:[%s2] sm:$0x1]
    %v95 = vperm.slane %v93, 0
    %v113 = vunpack.c.l.b16 %v77
    %v114 = vunpack.c.l.b16 %v78
    %v115 = vunpack.c.l.b16 %v79
    %v116 = vunpack.c.l.b16 %v80
    %v117 = vunpack.c.l.b16 %v81
    %v118 = vunpack.c.l.b16 %v82
    %v119 = vunpack.c.l.b16 %v83
    %v120 = vunpack.c.l.b16 %v84
    %v121 = vunpack.c.l.b16 %v85
    %v122 = vunpack.c.l.b16 %v86
    %v123 = vunpack.c.l.b16 %v87
    %v124 = vunpack.c.l.b16 %v88
    %v125 = vunpack.c.l.b16 %v89
    %v126 = vunpack.c.l.b16 %v90
    %v127 = vunpack.c.l.b16 %v91
    %v128 = vunpack.c.l.b16 %v92
    %v129 = vpack.c.b16 %v114, %v113
    %v130 = vpack.c.b16 %v116, %v115
    %v131 = vpack.c.b16 %v118, %v117
    %v132 = vpack.c.b16 %v120, %v119
    %v133 = vpack.c.b16 %v122, %v121
    %v134 = vpack.c.b16 %v124, %v123
    %v135 = vpack.c.b16 %v126, %v125
    %v136 = vpack.c.b16 %v128, %v127
    %145 = vmatpush.bf16.msra.mxu0 %v136
    %146 = vmatpush.bf16.msra.mxu0 %v135
    %147 = vmatpush.bf16.msra.mxu0 %v134
    %148 = vmatpush.bf16.msra.mxu0 %v133
    %149 = vmatpush.bf16.msra.mxu0 %v132
    %150 = vmatpush.bf16.msra.mxu0 %v131
    %151 = vmatpush.bf16.msra.mxu0 %v130
    %152 = vmatpush.bf16.msra.mxu0 %v129
    %153 = vmatmul.bf16.gmra.mxu0 %v76
    %v154 = vpop.f32.mrf.mxu0
    %v155 = vadd.f32 %v95, %v154
    %v156 = vpop.f32.mrf.mxu0
    %157 = vdwg.mxu0
    %v158 = vtanh.pop %v155
    %v159 = vpack.c.bf16 %v158, %v158
    %v160 = vld [vmem:[#allocation5] sm:$0xf]
    %v161 = vld [vmem:[#allocation5 + $0x4] sm:$0xf]
    %v162 = vld [vmem:[#allocation5 + $0x8] sm:$0xf]
    %v163 = vld [vmem:[#allocation5 + $0xc] sm:$0xf]
    %v164 = vld [vmem:[#allocation5 + $0x10] sm:$0xf]
    %v165 = vld [vmem:[#allocation5 + $0x14] sm:$0xf]
    %v166 = vld [vmem:[#allocation5 + $0x18] sm:$0xf]
    %v167 = vld [vmem:[#allocation5 + $0x1c] sm:$0xf]
    %v168 = vld [vmem:[#allocation5 + $0x20] sm:$0xf]
    %v169 = vld [vmem:[#allocation5 + $0x24] sm:$0xf]
    %v170 = vld [vmem:[#allocation5 + $0x28] sm:$0xf]
    %v171 = vld [vmem:[#allocation5 + $0x2c] sm:$0xf]
    %v172 = vld [vmem:[#allocation5 + $0x30] sm:$0xf]
    %v173 = vld [vmem:[#allocation5 + $0x34] sm:$0xf]
    %v174 = vld [vmem:[#allocation5 + $0x38] sm:$0xf]
    %v175 = vld [vmem:[#allocation5 + $0x3c] sm:$0xf]
    %v176 = vld [vmem:[%s4] sm:$0x1]
    %v178 = vperm.slane %v176, 0
    %v196 = vunpack.c.l.b16 %v160
    %v197 = vunpack.c.l.b16 %v161
    %v198 = vunpack.c.l.b16 %v162
    %v199 = vunpack.c.l.b16 %v163
    %v200 = vunpack.c.l.b16 %v164
    %v201 = vunpack.c.l.b16 %v165
    %v202 = vunpack.c.l.b16 %v166
    %v203 = vunpack.c.l.b16 %v167
    %v204 = vunpack.c.l.b16 %v168
    %v205 = vunpack.c.l.b16 %v169
    %v206 = vunpack.c.l.b16 %v170
    %v207 = vunpack.c.l.b16 %v171
    %v208 = vunpack.c.l.b16 %v172
    %v209 = vunpack.c.l.b16 %v173
    %v210 = vunpack.c.l.b16 %v174
    %v211 = vunpack.c.l.b16 %v175
    %v212 = vpack.c.b16 %v197, %v196
    %v213 = vpack.c.b16 %v199, %v198
    %v214 = vpack.c.b16 %v201, %v200
    %v215 = vpack.c.b16 %v203, %v202
    %v216 = vpack.c.b16 %v205, %v204
    %v217 = vpack.c.b16 %v207, %v206
    %v218 = vpack.c.b16 %v209, %v208
    %v219 = vpack.c.b16 %v211, %v210
    %228 = vmatpush.bf16.msra.mxu0 %v219
    %229 = vmatpush.bf16.msra.mxu0 %v218
    %230 = vmatpush.bf16.msra.mxu0 %v217
    %231 = vmatpush.bf16.msra.mxu0 %v216
    %232 = vmatpush.bf16.msra.mxu0 %v215
    %233 = vmatpush.bf16.msra.mxu0 %v214
    %234 = vmatpush.bf16.msra.mxu0 %v213
    %235 = vmatpush.bf16.msra.mxu0 %v212
    %236 = vmatmul.bf16.gmra.mxu0 %v159
    %v237 = vpop.f32.mrf.mxu0
    %v238 = vadd.f32 %v178, %v237
    %v239 = vpop.f32.mrf.mxu0
    %240 = vdwg.mxu0
    %v241 = vtanh.pop %v238
    %v242 = vpack.c.bf16 %v241, %v241
    %v243 = vld [vmem:[#allocation7] sm:$0xff]
    %v244 = vld [vmem:[#allocation7 + $0x8] sm:$0xff]
    %v245 = vld [vmem:[#allocation7 + $0x10] sm:$0xff]
    %v246 = vld [vmem:[#allocation7 + $0x18] sm:$0xff]
    %v247 = vld [vmem:[#allocation7 + $0x20] sm:$0xff]
    %v248 = vld [vmem:[#allocation7 + $0x28] sm:$0xff]
    %v249 = vld [vmem:[#allocation7 + $0x30] sm:$0xff]
    %v250 = vld [vmem:[#allocation7 + $0x38] sm:$0xff]
    %v251 = vld [vmem:[#allocation7 + $0x40] sm:$0xff]
    %v252 = vld [vmem:[#allocation7 + $0x48] sm:$0xff]
    %v253 = vld [vmem:[#allocation7 + $0x50] sm:$0xff]
    %v254 = vld [vmem:[#allocation7 + $0x58] sm:$0xff]
    %v255 = vld [vmem:[#allocation7 + $0x60] sm:$0xff]
    %v256 = vld [vmem:[#allocation7 + $0x68] sm:$0xff]
    %v257 = vld [vmem:[#allocation7 + $0x70] sm:$0xff]
    %v258 = vld [vmem:[#allocation7 + $0x78] sm:$0xff]
    %v259 = vld [vmem:[%s6] sm:$0x3]
    %v261 = vperm.slane %v259, 0
    %v262 = vperm.slane %v259, 1
    %v281 = vunpack.c.l.b16 %v243
    %v282 = vunpack.c.h.b16 %v243
    %v283 = vunpack.c.l.b16 %v244
    %v284 = vunpack.c.h.b16 %v244
    %v285 = vunpack.c.l.b16 %v245
    %v286 = vunpack.c.h.b16 %v245
    %v287 = vunpack.c.l.b16 %v246
    %v288 = vunpack.c.h.b16 %v246
    %v289 = vunpack.c.l.b16 %v247
    %v290 = vunpack.c.h.b16 %v247
    %v291 = vunpack.c.l.b16 %v248
    %v292 = vunpack.c.h.b16 %v248
    %v293 = vunpack.c.l.b16 %v249
    %v294 = vunpack.c.h.b16 %v249
    %v295 = vunpack.c.l.b16 %v250
    %v296 = vunpack.c.h.b16 %v250
    %v297 = vunpack.c.l.b16 %v251
    %v298 = vunpack.c.h.b16 %v251
    %v299 = vunpack.c.l.b16 %v252
    %v300 = vunpack.c.h.b16 %v252
    %v301 = vunpack.c.l.b16 %v253
    %v302 = vunpack.c.h.b16 %v253
    %v303 = vunpack.c.l.b16 %v254
    %v304 = vunpack.c.h.b16 %v254
    %v305 = vunpack.c.l.b16 %v255
    %v306 = vunpack.c.h.b16 %v255
    %v307 = vunpack.c.l.b16 %v256
    %v308 = vunpack.c.h.b16 %v256
    %v309 = vunpack.c.l.b16 %v257
    %v310 = vunpack.c.h.b16 %v257
    %v311 = vunpack.c.l.b16 %v258
    %v312 = vunpack.c.h.b16 %v258
    %v313 = vpack.c.b16 %v283, %v281
    %v314 = vpack.c.b16 %v284, %v282
    %v315 = vpack.c.b16 %v287, %v285
    %v316 = vpack.c.b16 %v288, %v286
    %v317 = vpack.c.b16 %v291, %v289
    %v318 = vpack.c.b16 %v292, %v290
    %v319 = vpack.c.b16 %v295, %v293
    %v320 = vpack.c.b16 %v296, %v294
    %v321 = vpack.c.b16 %v299, %v297
    %v322 = vpack.c.b16 %v300, %v298
    %v323 = vpack.c.b16 %v303, %v301
    %v324 = vpack.c.b16 %v304, %v302
    %v325 = vpack.c.b16 %v307, %v305
    %v326 = vpack.c.b16 %v308, %v306
    %v327 = vpack.c.b16 %v311, %v309
    %v328 = vpack.c.b16 %v312, %v310
    %345 = vmatpush.bf16.msra.mxu0 %v327
    %346 = vmatpush.bf16.msra.mxu0 %v325
    %347 = vmatpush.bf16.msra.mxu0 %v323
    %348 = vmatpush.bf16.msra.mxu0 %v321
    %349 = vmatpush.bf16.msra.mxu0 %v319
    %350 = vmatpush.bf16.msra.mxu0 %v317
    %351 = vmatpush.bf16.msra.mxu0 %v315
    %352 = vmatpush.bf16.msra.mxu0 %v313
    %353 = vmatmul.bf16.gmra.mxu0 %v242
    %v354 = vpop.f32.mrf.mxu0
    %v355 = vadd.f32 %v261, %v354
    %v356 = vpop.f32.mrf.mxu0
    %357 = vdwg.mxu0
    %358 = vmatpush.bf16.msra.mxu0 %v328
    %359 = vmatpush.bf16.msra.mxu0 %v326
    %360 = vmatpush.bf16.msra.mxu0 %v324
    %361 = vmatpush.bf16.msra.mxu0 %v322
    %362 = vmatpush.bf16.msra.mxu0 %v320
    %363 = vmatpush.bf16.msra.mxu0 %v318
    %364 = vmatpush.bf16.msra.mxu0 %v316
    %365 = vmatpush.bf16.msra.mxu0 %v314
    %366 = vmatmul.bf16.gmra.mxu0 %v242
    %v367 = vpop.f32.mrf.mxu0
    %v368 = vadd.f32 %v262, %v367
    %v369 = vpop.f32.mrf.mxu0
    %370 = vdwg.mxu0
    %v371 = vunpack.c.l.bf16 %v76
    %v372 = vmul.f32 %v368, 1.442695
    %v373 = vpow.pop %v372
    %v374 = vmul.f32 %v371, %v373
    %v375 = vadd.f32 %v355, %v374
    %v376 = vpack.c.bf16 %v375, %v375
    %377 = vst [vmem:[#allocation8] sm:$0xf] %v376
    %378 = vadd.xlane.f32.xlu0 %v368
    %v379 = vpop.xlane.xlu0 %378
    %vm380 = vcmask 64512
    %381 = vst.msk [vmem:[%s8] sm:$0xff] %vm380, %v379
    // Predicated region
    $region42: #{realnvp_fl_forward.1} parent=1 // pred_check
      _
    $region43: #{realnvp_fl_forward.1} parent=1 // pred_check_branch
      %383 = sbr.rel (0) target = $region45
    $region44: #{realnvp_fl_forward.1} parent=1 // pred_region
      %385 = vsyncadd [#allocation4], 0
      %s387 = sshll.u32 [#allocation8], 4
      %s388 = int_to_ptr.vmem [resolvable:$true] %s387
      %s389 = sshll.u32 %s7, 4
      %s390 = int_to_ptr.hbm [resolvable:$true] %s389
      %392 = dma.vmem_to_hbm [thread:$0]  %s388, 64, %s390, [#allocation4]
    $region45: #{realnvp_fl_forward.1} parent=1 // pred_fallthru
      _
    // Predicated region
    $region46: #{realnvp_fl_forward.1} parent=1 // pred_check
      _
    $region47: #{realnvp_fl_forward.1} parent=1 // pred_check_branch
      %394 = sbr.rel (0) target = $region49
    $region48: #{realnvp_fl_forward.1} parent=1 // pred_region
      _
    $region49: #{realnvp_fl_forward.1} parent=1 // pred_fallthru
      _
    // Predicated region
    $region50: #{realnvp_fl_forward.1} parent=1 // pred_check
      _
    $region51: #{realnvp_fl_forward.1} parent=1 // pred_check_branch
      %396 = sbr.rel (0) target = $region53
    $region52: #{realnvp_fl_forward.1} parent=1 // pred_region
      %398 = dma.done [#allocation4], 64
    $region53: #{realnvp_fl_forward.1} parent=1 // pred_fallthru
      _
    // Predicated region
    $region54: #{realnvp_fl_forward.1} parent=1 // pred_check
      _
    $region55: #{realnvp_fl_forward.1} parent=1 // pred_check_branch
      %400 = sbr.rel (0) target = $region57
    $region56: #{realnvp_fl_forward.1} parent=1 // pred_region
      _
    $region57: #{realnvp_fl_forward.1} parent=1 // pred_fallthru
      _
    %401 = vsyncpa [#allocation3], 1
    %402 = vsyncpa [#allocation6], 1
    %403 = vsyncpa [#allocation4], 1

</llo_original>
